<compile_context>
chip_gen: v5e
topology: v5e:2x2
jax: 0.10.0
libtpu: 0.0.40
codegen_flags: <defaults>
</compile_context>

<pallas_src>
import functools

import jax
import jax.numpy as jnp
from jax import lax
from jax.experimental import pallas as pl
from jax.experimental.pallas import tpu as pltpu


def _focal_loss_kernel(logits_ref, targets_ref, out_ref, *, alpha, gamma,
                       n_valid, tile_n):
    # Compute in f32 regardless of stored dtype (bf16 inputs only save DMA).
    logits = logits_ref[...].astype(jnp.float32)            # (tile_n, C)
    targets = targets_ref[...]                               # (tile_n, 1) int32
    tn, c = logits.shape

    # Numerically stable softmax pieces; exp(shifted) is reused for everything.
    m = jnp.max(logits, axis=-1, keepdims=True)               # (tile_n, 1)
    shifted = logits - m                                       # (tile_n, C)
    exp_shifted = jnp.exp(shifted)                             # (tile_n, C)
    sumexp = jnp.sum(exp_shifted, axis=-1, keepdims=True)      # (tile_n, 1)
    lse = jnp.log(sumexp)                                      # (tile_n, 1)

    class_ids = lax.broadcasted_iota(jnp.int32, (tn, c), 1)
    is_target = class_ids == targets                           # bool (tile_n, C)

    # ce = logsumexp(x) - x[target]   (F.cross_entropy, reduction='none')
    target_shifted = jnp.sum(jnp.where(is_target, shifted, 0.0),
                             axis=-1, keepdims=True)
    ce = lse - target_shifted                                  # (tile_n, 1)

    # 1 - p_t without cancellation and >= 0 by construction:
    #   1 - p_t = (sum over non-target classes of exp(shifted)) / sumexp
    others = jnp.sum(jnp.where(is_target, 0.0, exp_shifted),
                     axis=-1, keepdims=True)
    one_minus_pt = others / sumexp                             # (tile_n, 1)

    # Focal weight: integer gamma (default 2) via repeated VPU multiply
    # instead of a log+exp pow on the single EUP slot.
    g = float(gamma)
    if g == int(g) and 0 <= int(g) <= 8:
        fw = jnp.ones_like(one_minus_pt)
        for _ in range(int(g)):
            fw = fw * one_minus_pt
    else:
        fw = one_minus_pt ** g
    loss_rows = (alpha * fw) * ce                              # (tile_n, 1)

    # Mask padded rows in the last tile (grid may overrun the true batch).
    row_ids = (pl.program_id(0) * tile_n
               + lax.broadcasted_iota(jnp.int32, (tn, 1), 0))
    loss_rows = jnp.where(row_ids < n_valid, loss_rows, 0.0)

    # Per-block partial sum, written as a full (8, 128) aligned slab.
    out_ref[...] = jnp.broadcast_to(jnp.sum(loss_rows), out_ref.shape)


def focal_loss(logits, targets, alpha=1.0, gamma=2.0, tile_n_max=1024):
    n, c = logits.shape
    targets2d = targets.astype(jnp.int32).reshape(n, 1)

    def round_up(x, m):
        return (x + m - 1) // m * m

    # Big row tiles to amortize per-grid-step overhead, but row tile must be a
    # multiple of 8 (sublanes).  ~tile_n*C*4B per buffer stays well inside the
    # v7x 32 MiB scoped VMEM budget even with double buffering.
    tile_n = min(tile_n_max, round_up(n, 8))
    n_padded = round_up(n, tile_n)
    num_blocks = n_padded // tile_n

    if n_padded != n:
        logits = jnp.pad(logits, ((0, n_padded - n), (0, 0)))
        targets2d = jnp.pad(targets2d, ((0, n_padded - n), (0, 0)))

    kernel = functools.partial(_focal_loss_kernel, alpha=float(alpha),
                               gamma=float(gamma), n_valid=n, tile_n=tile_n)

    itemsize = jnp.dtype(logits.dtype).itemsize
    cost = pl.CostEstimate(
        flops=8 * n * c,
        transcendentals=n * c + 2 * n,
        bytes_accessed=n_padded * c * itemsize + n_padded * 4
        + num_blocks * 8 * 128 * 4,
    )

    partials = pl.pallas_call(
        kernel,
        out_shape=jax.ShapeDtypeStruct((num_blocks, 8, 128), jnp.float32),
        grid=(num_blocks,),
        in_specs=[
            pl.BlockSpec((tile_n, c), lambda i: (i, 0)),
            pl.BlockSpec((tile_n, 1), lambda i: (i, 0)),
        ],
        out_specs=pl.BlockSpec((1, 8, 128), lambda i: (i, 0, 0)),
        compiler_params=pltpu.CompilerParams(
            dimension_semantics=("parallel",),
            vmem_limit_bytes=32 * 1024 * 1024,
        ),
        cost_estimate=cost,
    )(logits, targets2d)

    # Finalize: sum partial sums and apply the mean's 1/N as a multiply.
    return jnp.sum(partials[:, 0, 0]) * (1.0 / n)


def focal_loss_ref(logits, targets, alpha=1.0, gamma=2.0):
    # Pure-JAX reference (correctness check only).
    logp = jax.nn.log_softmax(logits.astype(jnp.float32), axis=-1)
    ce = -jnp.take_along_axis(logp, targets[:, None].astype(jnp.int32),
                              axis=-1)[:, 0]
    p_t = jnp.exp(-ce)
    fw = alpha * (1.0 - p_t) ** gamma
    return jnp.mean(fw * ce)


if __name__ == "__main__":
    key = jax.random.PRNGKey(0)
    k1, k2 = jax.random.split(key)
    N, C = 64, 16                      # batch=64 rows, 16 classes
    logits = jax.random.normal(k1, (N, C), dtype=jnp.float32)
    targets = jax.random.randint(k2, (N,), 0, C, dtype=jnp.int32)

    out = focal_loss(logits, targets, alpha=1.0, gamma=2.0)
    out = jax.block_until_ready(out)

    ref = focal_loss_ref(logits, targets, alpha=1.0, gamma=2.0)
    assert jnp.allclose(out, ref, rtol=1e-5, atol=1e-5), (out, ref)
    print("KERNEL_OK")
</pallas_src>

<mosaic_0001>
module attributes {stable_mosaic.version = 11 : i64} {
  func.func @_focal_loss_kernel(%arg0: i32, %arg1: memref<64x16xf32, #tpu.memory_space<vmem>>, %arg2: memref<64x1xi32, #tpu.memory_space<vmem>>, %arg3: memref<1x8x128xf32, #tpu.memory_space<vmem>>) attributes {dimension_semantics = [#tpu.dimension_semantics<parallel>], iteration_bounds = array<i64: 1>, scalar_prefetch = 0 : i64, scratch_operands = 0 : i64, tpu.core_type = #tpu.core_type<tc>, window_params = [{transform_indices = @transform_0, window_bounds = array<i64: 64, 16>}, {transform_indices = @transform_1, window_bounds = array<i64: 64, 1>}, {transform_indices = @transform_2, window_bounds = array<i64: 1, 8, 128>}]} {
    %c0 = arith.constant 0 : index
    %c0_0 = arith.constant 0 : index
    %0 = vector.load %arg1[%c0, %c0_0] : memref<64x16xf32, #tpu.memory_space<vmem>>, vector<64x16xf32>
    %c0_1 = arith.constant 0 : index
    %c0_2 = arith.constant 0 : index
    %1 = vector.load %arg2[%c0_1, %c0_2] : memref<64x1xi32, #tpu.memory_space<vmem>>, vector<64x1xi32>
    %cst = arith.constant dense<0xFF800000> : vector<64xf32>
    %2 = vector.multi_reduction <maximumf>, %0, %cst [1] : vector<64x16xf32> to vector<64xf32>
    %3 = vector.shape_cast %2 : vector<64xf32> to vector<64x1xf32>
    %4 = vector.broadcast %3 : vector<64x1xf32> to vector<64x16xf32>
    %5 = arith.subf %0, %4 : vector<64x16xf32>
    %6 = math.exp %5 : vector<64x16xf32>
    %cst_3 = arith.constant dense<0.000000e+00> : vector<64xf32>
    %7 = vector.multi_reduction <add>, %6, %cst_3 [1] : vector<64x16xf32> to vector<64xf32>
    %8 = vector.shape_cast %7 : vector<64xf32> to vector<64x1xf32>
    %9 = math.log %8 : vector<64x1xf32>
    %10 = tpu.iota {dimensions = array<i32: 1>} : vector<64x16xi32>
    %11 = vector.broadcast %1 : vector<64x1xi32> to vector<64x16xi32>
    %12 = arith.cmpi eq, %10, %11 : vector<64x16xi32>
    %cst_4 = arith.constant 0.000000e+00 : f32
    %13 = vector.broadcast %cst_4 : f32 to vector<64x16xf32>
    %14 = arith.select %12, %5, %13 : vector<64x16xi1>, vector<64x16xf32>
    %cst_5 = arith.constant dense<0.000000e+00> : vector<64xf32>
    %15 = vector.multi_reduction <add>, %14, %cst_5 [1] : vector<64x16xf32> to vector<64xf32>
    %16 = vector.shape_cast %15 : vector<64xf32> to vector<64x1xf32>
    %17 = arith.subf %9, %16 : vector<64x1xf32>
    %cst_6 = arith.constant 0.000000e+00 : f32
    %18 = vector.broadcast %cst_6 : f32 to vector<64x16xf32>
    %19 = arith.select %12, %18, %6 : vector<64x16xi1>, vector<64x16xf32>
    %cst_7 = arith.constant dense<0.000000e+00> : vector<64xf32>
    %20 = vector.multi_reduction <add>, %19, %cst_7 [1] : vector<64x16xf32> to vector<64xf32>
    %21 = vector.shape_cast %20 : vector<64xf32> to vector<64x1xf32>
    %22 = arith.divf %21, %8 : vector<64x1xf32>
    %cst_8 = arith.constant 1.000000e+00 : f32
    %23 = vector.broadcast %cst_8 : f32 to vector<64x1xf32>
    %24 = arith.mulf %23, %22 : vector<64x1xf32>
    %25 = arith.mulf %24, %22 : vector<64x1xf32>
    %cst_9 = arith.constant 1.000000e+00 : f32
    %26 = vector.broadcast %cst_9 : f32 to vector<64x1xf32>
    %27 = arith.mulf %26, %25 : vector<64x1xf32>
    %28 = arith.mulf %27, %17 : vector<64x1xf32>
    %c64_i32 = arith.constant 64 : i32
    %29 = arith.muli %arg0, %c64_i32 : i32
    %30 = tpu.iota {dimensions = array<i32: 0>} : vector<64x1xi32>
    %31 = vector.broadcast %29 : i32 to vector<64x1xi32>
    %32 = arith.addi %31, %30 : vector<64x1xi32>
    %c64_i32_10 = arith.constant 64 : i32
    %33 = vector.broadcast %c64_i32_10 : i32 to vector<64x1xi32>
    %34 = arith.cmpi slt, %32, %33 : vector<64x1xi32>
    %cst_11 = arith.constant 0.000000e+00 : f32
    %35 = vector.broadcast %cst_11 : f32 to vector<64x1xf32>
    %36 = arith.select %34, %28, %35 : vector<64x1xi1>, vector<64x1xf32>
    %37 = vector.shape_cast %36 : vector<64x1xf32> to vector<1x64x1xf32>
    %cst_12 = arith.constant dense<0.000000e+00> : vector<1xf32>
    %38 = vector.multi_reduction <add>, %37, %cst_12 [1, 2] : vector<1x64x1xf32> to vector<1xf32>
    %39 = vector.shape_cast %38 : vector<1xf32> to vector<1x1x1xf32>
    %40 = vector.extract %39[0, 0, 0] : f32 from vector<1x1x1xf32>
    %41 = vector.broadcast %40 : f32 to vector<1x8x128xf32>
    %c0_13 = arith.constant 0 : index
    %c0_14 = arith.constant 0 : index
    %c0_15 = arith.constant 0 : index
    %42 = vector.load %arg3[%c0_13, %c0_14, %c0_15] : memref<1x8x128xf32, #tpu.memory_space<vmem>>, vector<1x8x128xf32>
    tpu.vector_store %arg3[%c0_13, %c0_14, %c0_15], %41 {strides = array<i32>} : memref<1x8x128xf32, #tpu.memory_space<vmem>>, vector<1x8x128xf32>,
    return
  }
  func.func @transform_0(%arg0: i32) -> (i32, i32) {
    %c0_i32 = arith.constant 0 : i32
    %c0_i32_0 = arith.constant 0 : i32
    return %arg0, %c0_i32 : i32, i32
  }
  func.func @transform_1(%arg0: i32) -> (i32, i32) {
    %c0_i32 = arith.constant 0 : i32
    %c0_i32_0 = arith.constant 0 : i32
    return %arg0, %c0_i32 : i32, i32
  }
  func.func @transform_2(%arg0: i32) -> (i32, i32, i32) {
    %c0_i32 = arith.constant 0 : i32
    %c0_i32_0 = arith.constant 0 : i32
    %c0_i32_1 = arith.constant 0 : i32
    return %arg0, %c0_i32, %c0_i32_0 : i32, i32, i32
  }
}

</mosaic_0001>

<llo_original>
// kernel: tpu_custom_call.1
$region0: #{tpu_custom_call.1}
  #allocation0 [shape = 'u32[]', space=smem, size = 0x4, offset = 0x4, fixed_abs, tag = 'smem constant byte address 0x4 - core index']
  #allocation1 [shape = 'u32[72,128]{1,0:T(1,128)}', space=vmem, size = 0x9000, scoped, tag = 'internal scratch']
  %s0 = inlined_call_operand.vmem [shape: f32[64,16], index: 0, kind: input, shape index: {}]
  %s1 = inlined_call_operand.vmem [shape: s32[64,1], index: 1, kind: input, shape index: {}]
  %s2 = inlined_call_operand.hbm [shape: f32[1,8,128], index: 2, kind: output, shape index: {}]
  %s3 = sld [smem:[#allocation0]]
  $region18: #{tpu_custom_call.1} parent=0
    _
  %s5 = ssub.s32 1, %s3
  %s6 = scalar_select 0, %s5, %s3
  $region1: #{tpu_custom_call.1} parent=0
    #allocation2 [shape = 'u8[4096]{0}', space=vmem, size = 0x1000, scoped, tag = 'output window, operand 0, single buffered']
    #allocation3 [shape = 's32[1]{0}', space=sflag, size = 0x4, scoped, tag = 'scoped memory for tpu_custom_call.1']
    %7 = vsyncpa [#allocation3], 0
    // Predicated region
    $region2: #{tpu_custom_call.1} parent=1 // pred_check
      _
    $region3: #{tpu_custom_call.1} parent=1 // pred_check_branch
      %9 = sbr.rel (0) target = $region5
    $region4: #{tpu_custom_call.1} parent=1 // pred_region
      _
    $region5: #{tpu_custom_call.1} parent=1 // pred_fallthru
      _
    // Predicated region
    $region6: #{tpu_custom_call.1} parent=1 // pred_check
      _
    $region7: #{tpu_custom_call.1} parent=1 // pred_check_branch
      %11 = sbr.rel (0) target = $region9
    $region8: #{tpu_custom_call.1} parent=1 // pred_region
      _
    $region9: #{tpu_custom_call.1} parent=1 // pred_fallthru
      _
    %v12 = vld [vmem:[%s0] sm:$0xff]
    %v13 = vld [vmem:[%s0 + $0x8] sm:$0xff]
    %v14 = vld [vmem:[%s0 + $0x10] sm:$0xff]
    %v15 = vld [vmem:[%s0 + $0x18] sm:$0xff]
    %v16 = vld [vmem:[%s0 + $0x20] sm:$0xff]
    %v17 = vld [vmem:[%s0 + $0x28] sm:$0xff]
    %v18 = vld [vmem:[%s0 + $0x30] sm:$0xff]
    %v19 = vld [vmem:[%s0 + $0x38] sm:$0xff]
    %v20 = vld [vmem:[%s1] sm:$0xff]
    %v21 = vld [vmem:[%s1 + $0x8] sm:$0xff]
    %v22 = vld [vmem:[%s1 + $0x10] sm:$0xff]
    %v23 = vld [vmem:[%s1 + $0x18] sm:$0xff]
    %v24 = vld [vmem:[%s1 + $0x20] sm:$0xff]
    %v25 = vld [vmem:[%s1 + $0x28] sm:$0xff]
    %v26 = vld [vmem:[%s1 + $0x30] sm:$0xff]
    %v27 = vld [vmem:[%s1 + $0x38] sm:$0xff]
    %vm28 = vcmask 130048
    %v29 = vsel %vm28, %v12, -inf
    %30 = vmax.xlane.f32.xlu0 %v29
    %v31 = vpop.xlane.xlu0 %30
    %v32 = vsel %vm28, %v13, -inf
    %33 = vmax.xlane.f32.xlu0 %v32
    %v34 = vpop.xlane.xlu0 %33
    %v35 = vsel %vm28, %v14, -inf
    %36 = vmax.xlane.f32.xlu0 %v35
    %v37 = vpop.xlane.xlu0 %36
    %v38 = vsel %vm28, %v15, -inf
    %39 = vmax.xlane.f32.xlu0 %v38
    %v40 = vpop.xlane.xlu0 %39
    %v41 = vsel %vm28, %v16, -inf
    %42 = vmax.xlane.f32.xlu0 %v41
    %v43 = vpop.xlane.xlu0 %42
    %v44 = vsel %vm28, %v17, -inf
    %45 = vmax.xlane.f32.xlu0 %v44
    %v46 = vpop.xlane.xlu0 %45
    %v47 = vsel %vm28, %v18, -inf
    %48 = vmax.xlane.f32.xlu0 %v47
    %v49 = vpop.xlane.xlu0 %48
    %v50 = vsel %vm28, %v19, -inf
    %51 = vmax.xlane.f32.xlu0 %v50
    %v52 = vpop.xlane.xlu0 %51
    %v53 = vsub.f32 %v12, %v31
    %v54 = vsub.f32 %v13, %v34
    %v55 = vsub.f32 %v14, %v37
    %v56 = vsub.f32 %v15, %v40
    %v57 = vsub.f32 %v16, %v43
    %v58 = vsub.f32 %v17, %v46
    %v59 = vsub.f32 %v18, %v49
    %v60 = vsub.f32 %v19, %v52
    %v61 = vmul.f32 %v53, 1.442695
    %v62 = vpow.pop %v61
    %v63 = vmul.f32 %v54, 1.442695
    %v64 = vpow.pop %v63
    %v65 = vmul.f32 %v55, 1.442695
    %v66 = vpow.pop %v65
    %v67 = vmul.f32 %v56, 1.442695
    %v68 = vpow.pop %v67
    %v69 = vmul.f32 %v57, 1.442695
    %v70 = vpow.pop %v69
    %v71 = vmul.f32 %v58, 1.442695
    %v72 = vpow.pop %v71
    %v73 = vmul.f32 %v59, 1.442695
    %v74 = vpow.pop %v73
    %v75 = vmul.f32 %v60, 1.442695
    %v76 = vpow.pop %v75
    %v77 = vsel %vm28, %v62, 0.0
    %78 = vadd.xlane.f32.xlu0 %v77
    %v79 = vpop.xlane.xlu0 %78
    %v80 = vsel %vm28, %v64, 0.0
    %81 = vadd.xlane.f32.xlu0 %v80
    %v82 = vpop.xlane.xlu0 %81
    %v83 = vsel %vm28, %v66, 0.0
    %84 = vadd.xlane.f32.xlu0 %v83
    %v85 = vpop.xlane.xlu0 %84
    %v86 = vsel %vm28, %v68, 0.0
    %87 = vadd.xlane.f32.xlu0 %v86
    %v88 = vpop.xlane.xlu0 %87
    %v89 = vsel %vm28, %v70, 0.0
    %90 = vadd.xlane.f32.xlu0 %v89
    %v91 = vpop.xlane.xlu0 %90
    %v92 = vsel %vm28, %v72, 0.0
    %93 = vadd.xlane.f32.xlu0 %v92
    %v94 = vpop.xlane.xlu0 %93
    %v95 = vsel %vm28, %v74, 0.0
    %96 = vadd.xlane.f32.xlu0 %v95
    %v97 = vpop.xlane.xlu0 %96
    %v98 = vsel %vm28, %v76, 0.0
    %99 = vadd.xlane.f32.xlu0 %v98
    %v100 = vpop.xlane.xlu0 %99
    %v101 = vlog2.pop %v79
    %v102 = vmul.f32 %v101, 0.6931472
    %v103 = vlog2.pop %v82
    %v104 = vmul.f32 %v103, 0.6931472
    %v105 = vlog2.pop %v85
    %v106 = vmul.f32 %v105, 0.6931472
    %v107 = vlog2.pop %v88
    %v108 = vmul.f32 %v107, 0.6931472
    %v109 = vlog2.pop %v91
    %v110 = vmul.f32 %v109, 0.6931472
    %v111 = vlog2.pop %v94
    %v112 = vmul.f32 %v111, 0.6931472
    %v113 = vlog2.pop %v97
    %v114 = vmul.f32 %v113, 0.6931472
    %v115 = vlog2.pop %v100
    %v116 = vmul.f32 %v115, 0.6931472
    %v117 = vlaneseq
    %v118 = vand.u32 %v117, 127
    %119 = vset.pattern.permute.xlu0 0
    %120 = vperm.xlu0 %119, %v20
    %v121 = vpop.permute.xlu0 %120
    %122 = vset.pattern.permute.xlu0 0
    %123 = vperm.xlu0 %122, %v21
    %v124 = vpop.permute.xlu0 %123
    %125 = vset.pattern.permute.xlu0 0
    %126 = vperm.xlu0 %125, %v22
    %v127 = vpop.permute.xlu0 %126
    %128 = vset.pattern.permute.xlu0 0
    %129 = vperm.xlu0 %128, %v23
    %v130 = vpop.permute.xlu0 %129
    %131 = vset.pattern.permute.xlu0 0
    %132 = vperm.xlu0 %131, %v24
    %v133 = vpop.permute.xlu0 %132
    %134 = vset.pattern.permute.xlu0 0
    %135 = vperm.xlu0 %134, %v25
    %v136 = vpop.permute.xlu0 %135
    %137 = vset.pattern.permute.xlu0 0
    %138 = vperm.xlu0 %137, %v26
    %v139 = vpop.permute.xlu0 %138
    %140 = vset.pattern.permute.xlu0 0
    %141 = vperm.xlu0 %140, %v27
    %v142 = vpop.permute.xlu0 %141
    %vm143 = vcmp.eq.s32.totalorder %v118, %v121
    %vm144 = vcmp.eq.s32.totalorder %v118, %v124
    %vm145 = vcmp.eq.s32.totalorder %v118, %v127
    %vm146 = vcmp.eq.s32.totalorder %v118, %v130
    %vm147 = vcmp.eq.s32.totalorder %v118, %v133
    %vm148 = vcmp.eq.s32.totalorder %v118, %v136
    %vm149 = vcmp.eq.s32.totalorder %v118, %v139
    %vm150 = vcmp.eq.s32.totalorder %v118, %v142
    %v151 = vsel %vm143, %v53, 0.0
    %v152 = vsel %vm144, %v54, 0.0
    %v153 = vsel %vm145, %v55, 0.0
    %v154 = vsel %vm146, %v56, 0.0
    %v155 = vsel %vm147, %v57, 0.0
    %v156 = vsel %vm148, %v58, 0.0
    %v157 = vsel %vm149, %v59, 0.0
    %v158 = vsel %vm150, %v60, 0.0
    %v159 = vsel %vm28, %v151, 0.0
    %160 = vadd.xlane.f32.xlu0 %v159
    %v161 = vpop.xlane.xlu0 %160
    %v162 = vsel %vm28, %v152, 0.0
    %163 = vadd.xlane.f32.xlu0 %v162
    %v164 = vpop.xlane.xlu0 %163
    %v165 = vsel %vm28, %v153, 0.0
    %166 = vadd.xlane.f32.xlu0 %v165
    %v167 = vpop.xlane.xlu0 %166
    %v168 = vsel %vm28, %v154, 0.0
    %169 = vadd.xlane.f32.xlu0 %v168
    %v170 = vpop.xlane.xlu0 %169
    %v171 = vsel %vm28, %v155, 0.0
    %172 = vadd.xlane.f32.xlu0 %v171
    %v173 = vpop.xlane.xlu0 %172
    %v174 = vsel %vm28, %v156, 0.0
    %175 = vadd.xlane.f32.xlu0 %v174
    %v176 = vpop.xlane.xlu0 %175
    %v177 = vsel %vm28, %v157, 0.0
    %178 = vadd.xlane.f32.xlu0 %v177
    %v179 = vpop.xlane.xlu0 %178
    %v180 = vsel %vm28, %v158, 0.0
    %181 = vadd.xlane.f32.xlu0 %v180
    %v182 = vpop.xlane.xlu0 %181
    %v183 = vsub.f32 %v102, %v161
    %v184 = vsub.f32 %v104, %v164
    %v185 = vsub.f32 %v106, %v167
    %v186 = vsub.f32 %v108, %v170
    %v187 = vsub.f32 %v110, %v173
    %v188 = vsub.f32 %v112, %v176
    %v189 = vsub.f32 %v114, %v179
    %v190 = vsub.f32 %v116, %v182
    %v191 = vsel %vm143, 0.0, %v62
    %v192 = vsel %vm144, 0.0, %v64
    %v193 = vsel %vm145, 0.0, %v66
    %v194 = vsel %vm146, 0.0, %v68
    %v195 = vsel %vm147, 0.0, %v70
    %v196 = vsel %vm148, 0.0, %v72
    %v197 = vsel %vm149, 0.0, %v74
    %v198 = vsel %vm150, 0.0, %v76
    %v199 = vsel %vm28, %v191, 0.0
    %200 = vadd.xlane.f32.xlu0 %v199
    %v201 = vpop.xlane.xlu0 %200
    %v202 = vsel %vm28, %v192, 0.0
    %203 = vadd.xlane.f32.xlu0 %v202
    %v204 = vpop.xlane.xlu0 %203
    %v205 = vsel %vm28, %v193, 0.0
    %206 = vadd.xlane.f32.xlu0 %v205
    %v207 = vpop.xlane.xlu0 %206
    %v208 = vsel %vm28, %v194, 0.0
    %209 = vadd.xlane.f32.xlu0 %v208
    %v210 = vpop.xlane.xlu0 %209
    %v211 = vsel %vm28, %v195, 0.0
    %212 = vadd.xlane.f32.xlu0 %v211
    %v213 = vpop.xlane.xlu0 %212
    %v214 = vsel %vm28, %v196, 0.0
    %215 = vadd.xlane.f32.xlu0 %v214
    %v216 = vpop.xlane.xlu0 %215
    %v217 = vsel %vm28, %v197, 0.0
    %218 = vadd.xlane.f32.xlu0 %v217
    %v219 = vpop.xlane.xlu0 %218
    %v220 = vsel %vm28, %v198, 0.0
    %221 = vadd.xlane.f32.xlu0 %v220
    %v222 = vpop.xlane.xlu0 %221
    %v223 = vrcp.pop %v79
    %v224 = vmul.f32 %v79, %v223
    %v225 = vsub.f32 1.0, %v224
    %v226 = vmul.f32 %v223, %v225
    %v227 = vadd.f32 %v223, %v226
    %vm228 = vweird.f32 %v79
    %vm229 = vweird.f32 %v223
    %vm230 = vmor %vm228, %vm229
    %v231 = vsel %vm230, %v223, %v227
    %v232 = vand.u32 2147483647, %v79
    %vm233 = vcmp.eq.f32.partialorder %v232, 8.507059e+37
    %v234 = vand.u32 %v79, 2147483648
    %v235 = vor.u32 1.1754944e-38, %v234
    %v236 = vsel %vm233, %v235, %v231
    %v237 = vmul.f32 %v201, %v236
    %v238 = vrcp.pop %v82
    %v239 = vmul.f32 %v82, %v238
    %v240 = vsub.f32 1.0, %v239
    %v241 = vmul.f32 %v238, %v240
    %v242 = vadd.f32 %v238, %v241
    %vm243 = vweird.f32 %v82
    %vm244 = vweird.f32 %v238
    %vm245 = vmor %vm243, %vm244
    %v246 = vsel %vm245, %v238, %v242
    %v247 = vand.u32 2147483647, %v82
    %vm248 = vcmp.eq.f32.partialorder %v247, 8.507059e+37
    %v249 = vand.u32 %v82, 2147483648
    %v250 = vor.u32 1.1754944e-38, %v249
    %v251 = vsel %vm248, %v250, %v246
    %v252 = vmul.f32 %v204, %v251
    %v253 = vrcp.pop %v85
    %v254 = vmul.f32 %v85, %v253
    %v255 = vsub.f32 1.0, %v254
    %v256 = vmul.f32 %v253, %v255
    %v257 = vadd.f32 %v253, %v256
    %vm258 = vweird.f32 %v85
    %vm259 = vweird.f32 %v253
    %vm260 = vmor %vm258, %vm259
    %v261 = vsel %vm260, %v253, %v257
    %v262 = vand.u32 2147483647, %v85
    %vm263 = vcmp.eq.f32.partialorder %v262, 8.507059e+37
    %v264 = vand.u32 %v85, 2147483648
    %v265 = vor.u32 1.1754944e-38, %v264
    %v266 = vsel %vm263, %v265, %v261
    %v267 = vmul.f32 %v207, %v266
    %v268 = vrcp.pop %v88
    %v269 = vmul.f32 %v88, %v268
    %v270 = vsub.f32 1.0, %v269
    %v271 = vmul.f32 %v268, %v270
    %v272 = vadd.f32 %v268, %v271
    %vm273 = vweird.f32 %v88
    %vm274 = vweird.f32 %v268
    %vm275 = vmor %vm273, %vm274
    %v276 = vsel %vm275, %v268, %v272
    %v277 = vand.u32 2147483647, %v88
    %vm278 = vcmp.eq.f32.partialorder %v277, 8.507059e+37
    %v279 = vand.u32 %v88, 2147483648
    %v280 = vor.u32 1.1754944e-38, %v279
    %v281 = vsel %vm278, %v280, %v276
    %v282 = vmul.f32 %v210, %v281
    %v283 = vrcp.pop %v91
    %v284 = vmul.f32 %v91, %v283
    %v285 = vsub.f32 1.0, %v284
    %v286 = vmul.f32 %v283, %v285
    %v287 = vadd.f32 %v283, %v286
    %vm288 = vweird.f32 %v91
    %vm289 = vweird.f32 %v283
    %vm290 = vmor %vm288, %vm289
    %v291 = vsel %vm290, %v283, %v287
    %v292 = vand.u32 2147483647, %v91
    %vm293 = vcmp.eq.f32.partialorder %v292, 8.507059e+37
    %v294 = vand.u32 %v91, 2147483648
    %v295 = vor.u32 1.1754944e-38, %v294
    %v296 = vsel %vm293, %v295, %v291
    %v297 = vmul.f32 %v213, %v296
    %v298 = vrcp.pop %v94
    %v299 = vmul.f32 %v94, %v298
    %v300 = vsub.f32 1.0, %v299
    %v301 = vmul.f32 %v298, %v300
    %v302 = vadd.f32 %v298, %v301
    %vm303 = vweird.f32 %v94
    %vm304 = vweird.f32 %v298
    %vm305 = vmor %vm303, %vm304
    %v306 = vsel %vm305, %v298, %v302
    %v307 = vand.u32 2147483647, %v94
    %vm308 = vcmp.eq.f32.partialorder %v307, 8.507059e+37
    %v309 = vand.u32 %v94, 2147483648
    %v310 = vor.u32 1.1754944e-38, %v309
    %v311 = vsel %vm308, %v310, %v306
    %v312 = vmul.f32 %v216, %v311
    %v313 = vrcp.pop %v97
    %v314 = vmul.f32 %v97, %v313
    %v315 = vsub.f32 1.0, %v314
    %v316 = vmul.f32 %v313, %v315
    %v317 = vadd.f32 %v313, %v316
    %vm318 = vweird.f32 %v97
    %vm319 = vweird.f32 %v313
    %vm320 = vmor %vm318, %vm319
    %v321 = vsel %vm320, %v313, %v317
    %v322 = vand.u32 2147483647, %v97
    %vm323 = vcmp.eq.f32.partialorder %v322, 8.507059e+37
    %v324 = vand.u32 %v97, 2147483648
    %v325 = vor.u32 1.1754944e-38, %v324
    %v326 = vsel %vm323, %v325, %v321
    %v327 = vmul.f32 %v219, %v326
    %v328 = vrcp.pop %v100
    %v329 = vmul.f32 %v100, %v328
    %v330 = vsub.f32 1.0, %v329
    %v331 = vmul.f32 %v328, %v330
    %v332 = vadd.f32 %v328, %v331
    %vm333 = vweird.f32 %v100
    %vm334 = vweird.f32 %v328
    %vm335 = vmor %vm333, %vm334
    %v336 = vsel %vm335, %v328, %v332
    %v337 = vand.u32 2147483647, %v100
    %vm338 = vcmp.eq.f32.partialorder %v337, 8.507059e+37
    %v339 = vand.u32 %v100, 2147483648
    %v340 = vor.u32 1.1754944e-38, %v339
    %v341 = vsel %vm338, %v340, %v336
    %v342 = vmul.f32 %v222, %v341
    %v343 = vmul.f32 %v237, %v237
    %v344 = vmul.f32 %v252, %v252
    %v345 = vmul.f32 %v267, %v267
    %v346 = vmul.f32 %v282, %v282
    %v347 = vmul.f32 %v297, %v297
    %v348 = vmul.f32 %v312, %v312
    %v349 = vmul.f32 %v327, %v327
    %v350 = vmul.f32 %v342, %v342
    %v351 = vmul.f32 %v343, %v183
    %v352 = vmul.f32 %v344, %v184
    %v353 = vmul.f32 %v345, %v185
    %v354 = vmul.f32 %v346, %v186
    %v355 = vmul.f32 %v347, %v187
    %v356 = vmul.f32 %v348, %v188
    %v357 = vmul.f32 %v349, %v189
    %v358 = vmul.f32 %v350, %v190
    %s359 = smul.u32 0, 64
    %v360 = vlaneseq
    %v361 = vshrl.u32 %v360, 7
    %v362 = vadd.s32 %v361, 8
    %v363 = vadd.s32 %v361, 16
    %v364 = vadd.s32 %v361, 24
    %v365 = vadd.s32 %v361, 32
    %v366 = vadd.s32 %v361, 40
    %v367 = vadd.s32 %v361, 48
    %v368 = vadd.s32 %v361, 56
    %v369 = vstv %s359
    %v370 = vadd.s32 %v369, %v361
    %v371 = vadd.s32 %v369, %v362
    %v372 = vadd.s32 %v369, %v363
    %v373 = vadd.s32 %v369, %v364
    %v374 = vadd.s32 %v369, %v365
    %v375 = vadd.s32 %v369, %v366
    %v376 = vadd.s32 %v369, %v367
    %v377 = vadd.s32 %v369, %v368
    %vm378 = vcmp.lt.s32.totalorder %v370, 64
    %vm379 = vcmp.lt.s32.totalorder %v371, 64
    %vm380 = vcmp.lt.s32.totalorder %v372, 64
    %vm381 = vcmp.lt.s32.totalorder %v373, 64
    %vm382 = vcmp.lt.s32.totalorder %v374, 64
    %vm383 = vcmp.lt.s32.totalorder %v375, 64
    %vm384 = vcmp.lt.s32.totalorder %v376, 64
    %vm385 = vcmp.lt.s32.totalorder %v377, 64
    %v386 = vsel %vm378, %v351, 0.0
    %v387 = vsel %vm379, %v352, 0.0
    %v388 = vsel %vm380, %v353, 0.0
    %v389 = vsel %vm381, %v354, 0.0
    %v390 = vsel %vm382, %v355, 0.0
    %v391 = vsel %vm383, %v356, 0.0
    %v392 = vsel %vm384, %v357, 0.0
    %v393 = vsel %vm385, %v358, 0.0
    %vm394 = vcmask 7168
    %v395 = vsel %vm394, %v386, 0.0
    %v396 = vsel %vm394, %v387, 0.0
    %v397 = vadd.f32 %v395, %v396
    %v398 = vsel %vm394, %v388, 0.0
    %v399 = vadd.f32 %v397, %v398
    %v400 = vsel %vm394, %v389, 0.0
    %v401 = vadd.f32 %v399, %v400
    %v402 = vsel %vm394, %v390, 0.0
    %v403 = vadd.f32 %v401, %v402
    %v404 = vsel %vm394, %v391, 0.0
    %v405 = vadd.f32 %v403, %v404
    %v406 = vsel %vm394, %v392, 0.0
    %v407 = vadd.f32 %v405, %v406
    %v408 = vsel %vm394, %v393, 0.0
    %v409 = vadd.f32 %v407, %v408
    %410 = vadd.xlane.f32.xlu0 %v409
    %v411 = vpop.xlane.xlu0 %410
    %v412 = vrot.slane %v411, 4
    %v413 = vadd.f32 %v411, %v412
    %v414 = vrot.slane %v413, 2
    %v415 = vadd.f32 %v413, %v414
    %v416 = vrot.slane %v415, 1
    %v417 = vadd.f32 %v415, %v416
    %s418 = vtos %v417
    %v419 = vstv %s418
    %420 = vst [vmem:[#allocation2] sm:$0xff] %v419
    // Predicated region
    $region10: #{tpu_custom_call.1} parent=1 // pred_check
      _
    $region11: #{tpu_custom_call.1} parent=1 // pred_check_branch
      %422 = sbr.rel (0) target = $region13
    $region12: #{tpu_custom_call.1} parent=1 // pred_region
      %424 = vsyncadd [#allocation3], 0
      %s426 = sshll.u32 [#allocation2], 4
      %s427 = int_to_ptr.vmem [resolvable:$true] %s426
      %s428 = sshll.u32 %s2, 4
      %s429 = int_to_ptr.hbm [resolvable:$true] %s428
      %431 = dma.vmem_to_hbm [thread:$0]  %s427, 128, %s429, [#allocation3]
    $region13: #{tpu_custom_call.1} parent=1 // pred_fallthru
      _
    // Predicated region
    $region14: #{tpu_custom_call.1} parent=1 // pred_check
      _
    $region15: #{tpu_custom_call.1} parent=1 // pred_check_branch
      %433 = sbr.rel (0) target = $region17
    $region16: #{tpu_custom_call.1} parent=1 // pred_region
      %435 = dma.done [#allocation3], 128
    $region17: #{tpu_custom_call.1} parent=1 // pred_fallthru
      _
    %436 = vsyncpa [#allocation3], 1

</llo_original>
